<compile_context>
chip_gen: v6e
topology: v6e:2x2x1
jax: 0.10.0
libtpu: 0.0.40
codegen_flags: <defaults>
</compile_context>

<pallas_src>
import functools

import jax
import jax.numpy as jnp
from jax.experimental import pallas as pl
from jax.experimental.pallas import tpu as pltpu


def _round_up(v, m):
    return (v + m - 1) // m * m


# --------------------------------------------------------------------------- #
# Kernel 1: fused projections
#   o1  = x @ [W + W_res | a_l_w]          (node-major, f32)
#   arT = a_r_w^T @ x^T                    (heads x nodes, f32)  dst-side scores
#   xwT = W^T @ x^T                        (hc x nodes, bf16)    src-side operand
# --------------------------------------------------------------------------- #
def _proj_kernel(x_ref, xt_ref, w1_ref, arwt_ref, wt_ref,
                 o1_ref, art_ref, xwt_ref):
    o1_ref[...] = jnp.dot(x_ref[...], w1_ref[...],
                          preferred_element_type=jnp.float32)
    art_ref[...] = jnp.dot(arwt_ref[...], xt_ref[...],
                           preferred_element_type=jnp.float32)
    xwt_ref[...] = jnp.dot(wt_ref[...], xt_ref[...],
                           preferred_element_type=jnp.float32).astype(xwt_ref.dtype)


# --------------------------------------------------------------------------- #
# Kernel 2: transposed, tiled masked attention + aggregation (online softmax)
# --------------------------------------------------------------------------- #
def _attn_kernel(mask_ref, adjt_ref, al_ref, art_ref, xwt_ref, out_ref,
                 m_scr, l_scr, *, n_heads, head_dim, n_src_tiles, neg_slope):
    i = pl.program_id(0)                                 # dst tile ("parallel")
    j = pl.program_id(1)                                 # src tile (reduction)

    @pl.when(j == 0)
    def _init():
        m_scr[...] = jnp.full_like(m_scr, -1e30)
        l_scr[...] = jnp.zeros_like(l_scr)
        out_ref[...] = jnp.zeros_like(out_ref)

    @pl.when(mask_ref[i * n_src_tiles + j] > 0)          # skip empty adjacency tiles
    def _compute():
        edge = adjt_ref[...] > 0                         # (t_src, t_dst), int8 compare
        al = al_ref[...]                                 # (t_src, H)     f32
        art = art_ref[...]                               # (h_pad, t_dst) f32
        xsrc = xwt_ref[...]                              # (hc, t_src)    bf16
        for h in range(n_heads):                         # H is small & static
            lo = h * head_dim
            s = al[:, h:h + 1] + art[h:h + 1, :]         # (t_src, t_dst)
            s = jnp.maximum(s, neg_slope * s)            # LeakyReLU(0.2)
            s = jnp.where(edge, s, -1e30)                # mask non-edges
            m_prev = m_scr[pl.ds(h, 1), :]               # (1, t_dst)
            m_new = jnp.maximum(m_prev, jnp.max(s, axis=0, keepdims=True))
            corr = jnp.exp(m_prev - m_new)               # rescale old partials
            # exp kept in f32 (v5e EUP has no bf16; on v6e/v7x a bf16 exp is ~2x).
            # Columns that have seen no edge yet accumulate exp(0)=1 garbage; it is
            # wiped by corr==0 once a real edge arrives or by `valid` at finalize.
            p = jnp.exp(s - m_new)                       # (t_src, t_dst)
            l_scr[pl.ds(h, 1), :] = (corr * l_scr[pl.ds(h, 1), :]
                                     + jnp.sum(p, axis=0, keepdims=True))
            out_ref[pl.ds(lo, head_dim), :] = (
                corr * out_ref[pl.ds(lo, head_dim), :]
                + jnp.dot(xsrc[lo:lo + head_dim, :], p.astype(jnp.bfloat16),
                          preferred_element_type=jnp.float32))
            m_scr[pl.ds(h, 1), :] = m_new

    @pl.when(j == pl.num_programs(1) - 1)
    def _finalize():
        valid = m_scr[...] > -1e29                       # columns with >= 1 in-edge
        inv = jnp.where(valid, 1.0 / jnp.maximum(l_scr[...], 1e-30), 0.0)
        for h in range(n_heads):
            lo = h * head_dim
            out_ref[pl.ds(lo, head_dim), :] = (
                out_ref[pl.ds(lo, head_dim), :] * inv[h:h + 1, :])


# --------------------------------------------------------------------------- #
# Wrapper
# --------------------------------------------------------------------------- #
def gat_layer_forward(x, W, att_l, att_r, adj, W_res, *,
                      n_heads, head_dim, t_dst=512, t_src=512):
    n, d_in = x.shape
    hc = n_heads * head_dim
    h_pad = _round_up(n_heads, 8)

    # --- tile sizing: dst/src are lane dims in kernel 2 -> multiples of 128 ---
    cap = max(128, pl.next_power_of_2(n))
    t_src = min(t_src, cap)
    t_dst = min(t_dst, cap)
    assert t_src % 128 == 0 and (t_src & (t_src - 1)) == 0
    assert t_dst % 128 == 0 and (t_dst & (t_dst - 1)) == 0
    n_pad = _round_up(n, max(t_src, t_dst))
    # Give the "parallel" dst axis >= 4 tiles (keeps both TCs busy on v7x) if possible.
    while n_pad // t_dst < 4 and t_dst > 128:
        t_dst //= 2
    assert n_pad % t_src == 0 and n_pad % t_dst == 0   # exact grid coverage
    t_rows = t_src
    n_dst_tiles = n_pad // t_dst
    n_src_tiles = n_pad // t_src

    f1 = hc + n_heads                                   # [ x@(W+W_res) | a_l ]
    f1_pad = _round_up(f1, 128)

    # --- parameter / input preprocessing (one-time layout plumbing) ---
    w3 = W.reshape(d_in, n_heads, head_dim)
    a_l_w = jnp.sum(w3 * att_l[None, :, :], axis=-1)    # (d_in, H)
    a_r_w = jnp.sum(w3 * att_r[None, :, :], axis=-1)    # (d_in, H)
    w1 = jnp.zeros((d_in, f1_pad), jnp.float32)
    w1 = w1.at[:, :hc].set(W + W_res)                   # xw + residual fused
    w1 = w1.at[:, hc:hc + n_heads].set(a_l_w)
    w1 = w1.astype(jnp.bfloat16)
    arwt = jnp.zeros((h_pad, d_in), jnp.float32).at[:n_heads].set(a_r_w.T)
    arwt = arwt.astype(jnp.bfloat16)
    wt = W.T.astype(jnp.bfloat16)                       # (hc, d_in)

    x_p = jnp.zeros((n_pad, d_in), jnp.float32).at[:n].set(x).astype(jnp.bfloat16)
    xt_p = x_p.T                                        # (d_in, n_pad) bf16

    adj_bin = jnp.zeros((n_pad, n_pad), jnp.bool_).at[:n, :n].set(adj > 0)  # [dst,src]
    adjt_i8 = adj_bin.T.astype(jnp.int8)                                    # [src,dst]
    tile_mask = adj_bin.reshape(n_dst_tiles, t_dst, n_src_tiles, t_src).any(
        axis=(1, 3)).astype(jnp.int32).reshape(-1)      # (n_dst_tiles*n_src_tiles,)

    # --- kernel 1: fused projections ---
    o1, art, xwt = pl.pallas_call(
        _proj_kernel,
        out_shape=(jax.ShapeDtypeStruct((n_pad, f1_pad), jnp.float32),
                   jax.ShapeDtypeStruct((h_pad, n_pad), jnp.float32),
                   jax.ShapeDtypeStruct((hc, n_pad), jnp.bfloat16)),
        grid_spec=pltpu.PrefetchScalarGridSpec(
            num_scalar_prefetch=0,
            grid=(n_pad // t_rows,),
            in_specs=[pl.BlockSpec((t_rows, d_in), lambda i: (i, 0)),
                      pl.BlockSpec((d_in, t_rows), lambda i: (0, i)),
                      pl.BlockSpec((d_in, f1_pad), lambda i: (0, 0)),
                      pl.BlockSpec((h_pad, d_in), lambda i: (0, 0)),
                      pl.BlockSpec((hc, d_in), lambda i: (0, 0))],
            out_specs=[pl.BlockSpec((t_rows, f1_pad), lambda i: (i, 0)),
                       pl.BlockSpec((h_pad, t_rows), lambda i: (0, i)),
                       pl.BlockSpec((hc, t_rows), lambda i: (0, i))]),
        compiler_params=pltpu.CompilerParams(
            dimension_semantics=("parallel",)),
    )(x_p, xt_p, w1, arwt, wt)

    al_nh = o1[:, hc:hc + n_heads]                      # (n_pad, H) f32, src-side a_l

    # --- kernel 2: transposed masked attention + aggregation ---
    kernel = functools.partial(_attn_kernel, n_heads=n_heads, head_dim=head_dim,
                               n_src_tiles=n_src_tiles, neg_slope=0.2)
    aggt = pl.pallas_call(
        kernel,
        out_shape=jax.ShapeDtypeStruct((hc, n_pad), jnp.float32),
        grid_spec=pltpu.PrefetchScalarGridSpec(
            num_scalar_prefetch=1,                      # tile-occupancy map -> SMEM
            grid=(n_dst_tiles, n_src_tiles),
            in_specs=[pl.BlockSpec((t_src, t_dst), lambda i, j, m: (j, i)),    # adj^T
                      pl.BlockSpec((t_src, n_heads), lambda i, j, m: (j, 0)),  # a_l
                      pl.BlockSpec((h_pad, t_dst), lambda i, j, m: (0, i)),    # a_r^T
                      pl.BlockSpec((hc, t_src), lambda i, j, m: (0, j))],      # xw^T
            out_specs=pl.BlockSpec((hc, t_dst), lambda i, j, m: (0, i)),
            scratch_shapes=[pltpu.VMEM((h_pad, t_dst), jnp.float32),   # running max
                            pltpu.VMEM((h_pad, t_dst), jnp.float32)]), # running denom
        compiler_params=pltpu.CompilerParams(
            dimension_semantics=("parallel", "arbitrary"),
            vmem_limit_bytes=48 * 1024 * 1024),
    )(tile_mask, adjt_i8, al_nh, art, xwt)

    # --- epilogue (plain XLA): node output = (xw + residual) + aggregate ---
    return o1[:n, :hc] + aggt[:, :n].T


# --------------------------------------------------------------------------- #
# Pure-JAX fp32 reference of the same forward semantics (for testing)
# --------------------------------------------------------------------------- #
def _reference(x, W, att_l, att_r, adj, W_res, n_heads, head_dim):
    N = x.shape[0]
    xw = x @ W
    x3 = xw.reshape(N, n_heads, head_dim)
    al = jnp.sum(x3 * att_l[None], axis=-1)             # (N, H)
    ar = jnp.sum(x3 * att_r[None], axis=-1)             # (N, H)
    outs = []
    for h in range(n_heads):
        s = ar[:, None, h] + al[None, :, h]             # (dst, src)
        s = jnp.where(s > 0, s, 0.2 * s)
        m = jnp.where(adj > 0, s, -1e30)
        rmax = jnp.max(m, axis=1, keepdims=True)
        p = jnp.where(adj > 0, jnp.exp(s - rmax), 0.0)
        d = jnp.sum(p, axis=1, keepdims=True)
        coeff = p * jnp.where(d > 0, 1.0 / d, 0.0)
        outs.append(x3[:, h, :] + coeff @ x3[:, h, :])
    return jnp.concatenate(outs, axis=1) + x @ W_res


if __name__ == "__main__":
    N, D_in, n_heads, out_total = 64, 16, 4, 32
    C = out_total // n_heads

    key = jax.random.PRNGKey(0)
    k = jax.random.split(key, 5)
    x = jax.random.normal(k[0], (N, D_in), jnp.float32)

    def xavier(kk, shape, fan_in, fan_out):
        b = (6.0 / (fan_in + fan_out)) ** 0.5
        return jax.random.uniform(kk, shape, jnp.float32, -b, b)

    W = xavier(k[1], (D_in, out_total), D_in, out_total)          # lin.weight^T
    att_l = xavier(k[2], (n_heads, C), n_heads * C, C)            # att_l squeezed (H, C)
    att_r = xavier(k[3], (n_heads, C), n_heads * C, C)
    W_res = xavier(k[4], (D_in, out_total), D_in, out_total)      # lin_residual.weight^T

    # deterministic graph: self-loops + bidirectional ring; adj[dst, src]
    eye = jnp.eye(N, dtype=jnp.float32)
    adj = jnp.clip(eye + jnp.roll(eye, 1, axis=1) + jnp.roll(eye, -1, axis=1), 0.0, 1.0)

    out = gat_layer_forward(x, W, att_l, att_r, adj, W_res,
                            n_heads=n_heads, head_dim=C)
    out = jax.block_until_ready(out)

    ref = _reference(x, W, att_l, att_r, adj, W_res, n_heads, C)
    assert out.shape == (N, out_total)
    max_err = float(jnp.max(jnp.abs(out - ref)))
    # bf16 MXU operands => looser tolerance than the pure fp32 path.
    assert jnp.allclose(out, ref, atol=1e-1, rtol=1e-1), f"mismatch vs reference (max err {max_err})"
    print("KERNEL_OK")
</pallas_src>

<mosaic_0001>
module attributes {stable_mosaic.version = 11 : i64} {
  func.func @_proj_kernel(%arg0: i32, %arg1: memref<128x16xbf16, #tpu.memory_space<vmem>>, %arg2: memref<16x128xbf16, #tpu.memory_space<vmem>>, %arg3: memref<16x128xbf16, #tpu.memory_space<vmem>>, %arg4: memref<8x16xbf16, #tpu.memory_space<vmem>>, %arg5: memref<32x16xbf16, #tpu.memory_space<vmem>>, %arg6: memref<128x128xf32, #tpu.memory_space<vmem>>, %arg7: memref<8x128xf32, #tpu.memory_space<vmem>>, %arg8: memref<32x128xbf16, #tpu.memory_space<vmem>>) attributes {dimension_semantics = [#tpu.dimension_semantics<parallel>], iteration_bounds = array<i64: 1>, scalar_prefetch = 0 : i64, scratch_operands = 0 : i64, tpu.core_type = #tpu.core_type<tc>, window_params = [{transform_indices = @transform_0, window_bounds = array<i64: 128, 16>}, {transform_indices = @transform_1, window_bounds = array<i64: 16, 128>}, {pipeline_mode = #tpu.pipeline_mode<synchronous>, transform_indices = @transform_2, window_bounds = array<i64: 16, 128>}, {pipeline_mode = #tpu.pipeline_mode<synchronous>, transform_indices = @transform_3, window_bounds = array<i64: 8, 16>}, {pipeline_mode = #tpu.pipeline_mode<synchronous>, transform_indices = @transform_4, window_bounds = array<i64: 32, 16>}, {transform_indices = @transform_5, window_bounds = array<i64: 128, 128>}, {transform_indices = @transform_6, window_bounds = array<i64: 8, 128>}, {transform_indices = @transform_7, window_bounds = array<i64: 32, 128>}]} {
    %c0 = arith.constant 0 : index
    %c0_0 = arith.constant 0 : index
    %0 = vector.load %arg1[%c0, %c0_0] : memref<128x16xbf16, #tpu.memory_space<vmem>>, vector<128x16xbf16>
    %c0_1 = arith.constant 0 : index
    %c0_2 = arith.constant 0 : index
    %1 = vector.load %arg3[%c0_1, %c0_2] : memref<16x128xbf16, #tpu.memory_space<vmem>>, vector<16x128xbf16>
    %cst = arith.constant dense<0.000000e+00> : vector<128x128xf32>
    %2 = tpu.matmul %0, %1, %cst {dimension_numbers = #tpu.dot_dimension_numbers<[1], [0], [0], [1], [0, 0, 1, 1], [], []>} : vector<128x16xbf16>, vector<16x128xbf16>, vector<128x128xf32> -> vector<128x128xf32>
    %c0_3 = arith.constant 0 : index
    %c0_4 = arith.constant 0 : index
    %3 = vector.load %arg6[%c0_3, %c0_4] : memref<128x128xf32, #tpu.memory_space<vmem>>, vector<128x128xf32>
    tpu.vector_store %arg6[%c0_3, %c0_4], %2 {strides = array<i32>} : memref<128x128xf32, #tpu.memory_space<vmem>>, vector<128x128xf32>,
    %c0_5 = arith.constant 0 : index
    %c0_6 = arith.constant 0 : index
    %4 = vector.load %arg4[%c0_5, %c0_6] : memref<8x16xbf16, #tpu.memory_space<vmem>>, vector<8x16xbf16>
    %c0_7 = arith.constant 0 : index
    %c0_8 = arith.constant 0 : index
    %5 = vector.load %arg2[%c0_7, %c0_8] : memref<16x128xbf16, #tpu.memory_space<vmem>>, vector<16x128xbf16>
    %cst_9 = arith.constant dense<0.000000e+00> : vector<8x128xf32>
    %6 = tpu.matmul %4, %5, %cst_9 {dimension_numbers = #tpu.dot_dimension_numbers<[1], [0], [0], [1], [0, 0, 1, 1], [], []>} : vector<8x16xbf16>, vector<16x128xbf16>, vector<8x128xf32> -> vector<8x128xf32>
    %c0_10 = arith.constant 0 : index
    %c0_11 = arith.constant 0 : index
    %7 = vector.load %arg7[%c0_10, %c0_11] : memref<8x128xf32, #tpu.memory_space<vmem>>, vector<8x128xf32>
    tpu.vector_store %arg7[%c0_10, %c0_11], %6 {strides = array<i32>} : memref<8x128xf32, #tpu.memory_space<vmem>>, vector<8x128xf32>,
    %c0_12 = arith.constant 0 : index
    %c0_13 = arith.constant 0 : index
    %8 = vector.load %arg5[%c0_12, %c0_13] : memref<32x16xbf16, #tpu.memory_space<vmem>>, vector<32x16xbf16>
    %c0_14 = arith.constant 0 : index
    %c0_15 = arith.constant 0 : index
    %9 = vector.load %arg2[%c0_14, %c0_15] : memref<16x128xbf16, #tpu.memory_space<vmem>>, vector<16x128xbf16>
    %cst_16 = arith.constant dense<0.000000e+00> : vector<32x128xf32>
    %10 = tpu.matmul %8, %9, %cst_16 {dimension_numbers = #tpu.dot_dimension_numbers<[1], [0], [0], [1], [0, 0, 1, 1], [], []>} : vector<32x16xbf16>, vector<16x128xbf16>, vector<32x128xf32> -> vector<32x128xf32>
    %11 = arith.truncf %10 : vector<32x128xf32> to vector<32x128xbf16>
    %c0_17 = arith.constant 0 : index
    %c0_18 = arith.constant 0 : index
    %12 = vector.load %arg8[%c0_17, %c0_18] : memref<32x128xbf16, #tpu.memory_space<vmem>>, vector<32x128xbf16>
    tpu.vector_store %arg8[%c0_17, %c0_18], %11 {strides = array<i32>} : memref<32x128xbf16, #tpu.memory_space<vmem>>, vector<32x128xbf16>,
    return
  }
  func.func @transform_0(%arg0: i32) -> (i32, i32) {
    %c0_i32 = arith.constant 0 : i32
    %c0_i32_0 = arith.constant 0 : i32
    return %arg0, %c0_i32 : i32, i32
  }
  func.func @transform_1(%arg0: i32) -> (i32, i32) {
    %c0_i32 = arith.constant 0 : i32
    %c0_i32_0 = arith.constant 0 : i32
    return %c0_i32, %arg0 : i32, i32
  }
  func.func @transform_2(%arg0: i32) -> (i32, i32) {
    %c0_i32 = arith.constant 0 : i32
    %c0_i32_0 = arith.constant 0 : i32
    %c0_i32_1 = arith.constant 0 : i32
    return %c0_i32, %c0_i32_0 : i32, i32
  }
  func.func @transform_3(%arg0: i32) -> (i32, i32) {
    %c0_i32 = arith.constant 0 : i32
    %c0_i32_0 = arith.constant 0 : i32
    %c0_i32_1 = arith.constant 0 : i32
    return %c0_i32, %c0_i32_0 : i32, i32
  }
  func.func @transform_4(%arg0: i32) -> (i32, i32) {
    %c0_i32 = arith.constant 0 : i32
    %c0_i32_0 = arith.constant 0 : i32
    %c0_i32_1 = arith.constant 0 : i32
    return %c0_i32, %c0_i32_0 : i32, i32
  }
  func.func @transform_5(%arg0: i32) -> (i32, i32) {
    %c0_i32 = arith.constant 0 : i32
    %c0_i32_0 = arith.constant 0 : i32
    return %arg0, %c0_i32 : i32, i32
  }
  func.func @transform_6(%arg0: i32) -> (i32, i32) {
    %c0_i32 = arith.constant 0 : i32
    %c0_i32_0 = arith.constant 0 : i32
    return %c0_i32, %arg0 : i32, i32
  }
  func.func @transform_7(%arg0: i32) -> (i32, i32) {
    %c0_i32 = arith.constant 0 : i32
    %c0_i32_0 = arith.constant 0 : i32
    return %c0_i32, %arg0 : i32, i32
  }
}

</mosaic_0001>

<llo_original>
// kernel: tpu_custom_call.1
$region0: #{tpu_custom_call.1}
  #allocation0 [shape = 'u32[]', space=smem, size = 0x4, offset = 0x4, fixed_abs, tag = 'smem constant byte address 0x4 - core index']
  #allocation1 [shape = 'u32[144,128]{1,0:T(1,128)}', space=vmem, size = 0x12000, scoped, tag = 'internal scratch']
  %s0 = inlined_call_operand.vmem [shape: bf16[128,16], index: 0, kind: input, shape index: {}]
  %s1 = inlined_call_operand.vmem [shape: bf16[16,128], index: 1, kind: input, shape index: {}]
  %s2 = inlined_call_operand.vmem [shape: bf16[16,128], index: 2, kind: input, shape index: {}]
  %s3 = inlined_call_operand.vmem [shape: bf16[8,16], index: 3, kind: input, shape index: {}]
  %s4 = inlined_call_operand.vmem [shape: bf16[32,16], index: 4, kind: input, shape index: {}]
  %s5 = inlined_call_operand.hbm [shape: f32[128,128], index: 5, kind: output, shape index: {0}]
  %s6 = inlined_call_operand.hbm [shape: f32[8,128], index: 6, kind: output, shape index: {1}]
  %s7 = inlined_call_operand.hbm [shape: bf16[32,128], index: 7, kind: output, shape index: {2}]
  %8 = xla_tuple %s5, %s6, %s7
  %s9 = sld [smem:[#allocation0]]
  $region46: #{tpu_custom_call.1} parent=0
    _
  %s11 = ssub.s32 1, %s9
  %s12 = scalar_select 0, %s11, %s9
  $region1: #{tpu_custom_call.1} parent=0
    #allocation2 [shape = 'u8[65536]{0}', space=vmem, size = 0x10000, scoped, tag = 'output window, operand 0, single buffered']
    #allocation3 [shape = 's32[1]{0}', space=sflag, size = 0x4, scoped, tag = 'scoped memory for tpu_custom_call.1']
    #allocation4 [shape = 'u8[4096]{0}', space=vmem, size = 0x1000, scoped, tag = 'output window, operand 1, single buffered']
    #allocation5 [shape = 's32[1]{0}', space=sflag, size = 0x4, scoped, tag = 'scoped memory for tpu_custom_call.1']
    #allocation6 [shape = 'u8[8192]{0}', space=vmem, size = 0x2000, scoped, tag = 'output window, operand 2, single buffered']
    %13 = vsyncpa [#allocation3], 0
    %14 = vsyncpa [#allocation5], 0
    // Predicated region
    $region2: #{tpu_custom_call.1} parent=1 // pred_check
      _
    $region3: #{tpu_custom_call.1} parent=1 // pred_check_branch
      %16 = sbr.rel (0) target = $region5
    $region4: #{tpu_custom_call.1} parent=1 // pred_region
      _
    $region5: #{tpu_custom_call.1} parent=1 // pred_fallthru
      _
    // Predicated region
    $region6: #{tpu_custom_call.1} parent=1 // pred_check
      _
    $region7: #{tpu_custom_call.1} parent=1 // pred_check_branch
      %18 = sbr.rel (0) target = $region9
    $region8: #{tpu_custom_call.1} parent=1 // pred_region
      _
    $region9: #{tpu_custom_call.1} parent=1 // pred_fallthru
      _
    // Predicated region
    $region10: #{tpu_custom_call.1} parent=1 // pred_check
      _
    $region11: #{tpu_custom_call.1} parent=1 // pred_check_branch
      %20 = sbr.rel (0) target = $region13
    $region12: #{tpu_custom_call.1} parent=1 // pred_region
      _
    $region13: #{tpu_custom_call.1} parent=1 // pred_fallthru
      _
    // Predicated region
    $region14: #{tpu_custom_call.1} parent=1 // pred_check
      _
    $region15: #{tpu_custom_call.1} parent=1 // pred_check_branch
      %22 = sbr.rel (0) target = $region17
    $region16: #{tpu_custom_call.1} parent=1 // pred_region
      _
    $region17: #{tpu_custom_call.1} parent=1 // pred_fallthru
      _
    // Predicated region
    $region18: #{tpu_custom_call.1} parent=1 // pred_check
      _
    $region19: #{tpu_custom_call.1} parent=1 // pred_check_branch
      %24 = sbr.rel (0) target = $region21
    $region20: #{tpu_custom_call.1} parent=1 // pred_region
      _
    $region21: #{tpu_custom_call.1} parent=1 // pred_fallthru
      _
    %v26 = vld [vmem:[%s0] sm:$0xf]
    %v27 = vld [vmem:[%s0 + $0x4] sm:$0xf]
    %v28 = vld [vmem:[%s0 + $0x8] sm:$0xf]
    %v29 = vld [vmem:[%s0 + $0xc] sm:$0xf]
    %v30 = vld [vmem:[%s0 + $0x10] sm:$0xf]
    %v31 = vld [vmem:[%s0 + $0x14] sm:$0xf]
    %v32 = vld [vmem:[%s0 + $0x18] sm:$0xf]
    %v33 = vld [vmem:[%s0 + $0x1c] sm:$0xf]
    %v34 = vld [vmem:[%s0 + $0x20] sm:$0xf]
    %v35 = vld [vmem:[%s0 + $0x24] sm:$0xf]
    %v36 = vld [vmem:[%s0 + $0x28] sm:$0xf]
    %v37 = vld [vmem:[%s0 + $0x2c] sm:$0xf]
    %v38 = vld [vmem:[%s0 + $0x30] sm:$0xf]
    %v39 = vld [vmem:[%s0 + $0x34] sm:$0xf]
    %v40 = vld [vmem:[%s0 + $0x38] sm:$0xf]
    %v41 = vld [vmem:[%s0 + $0x3c] sm:$0xf]
    %v42 = vld [vmem:[%s2] sm:$0xf]
    %v43 = vld [vmem:[%s2 + $0x4] sm:$0xf]
    %v60 = vunpack.c.l.b16 %v26
    %v61 = vunpack.c.l.b16 %v27
    %v62 = vunpack.c.l.b16 %v28
    %v63 = vunpack.c.l.b16 %v29
    %v64 = vunpack.c.l.b16 %v30
    %v65 = vunpack.c.l.b16 %v31
    %v66 = vunpack.c.l.b16 %v32
    %v67 = vunpack.c.l.b16 %v33
    %v68 = vunpack.c.l.b16 %v34
    %v69 = vunpack.c.l.b16 %v35
    %v70 = vunpack.c.l.b16 %v36
    %v71 = vunpack.c.l.b16 %v37
    %v72 = vunpack.c.l.b16 %v38
    %v73 = vunpack.c.l.b16 %v39
    %v74 = vunpack.c.l.b16 %v40
    %v75 = vunpack.c.l.b16 %v41
    %v76 = vpack.c.b16 %v61, %v60
    %v77 = vpack.c.b16 %v63, %v62
    %v78 = vpack.c.b16 %v65, %v64
    %v79 = vpack.c.b16 %v67, %v66
    %v80 = vpack.c.b16 %v69, %v68
    %v81 = vpack.c.b16 %v71, %v70
    %v82 = vpack.c.b16 %v73, %v72
    %v83 = vpack.c.b16 %v75, %v74
    %v86 = vunpack.c.l.b16 %v42
    %v87 = vunpack.c.l.b16 %v43
    %v88 = vpack.c.b16 %v87, %v86
    %vm90 = vcmask 130048
    %v92 = vsel %vm90, %v76, 0
    %v95 = vsel %vm90, %v77, 0
    %v98 = vsel %vm90, %v78, 0
    %v101 = vsel %vm90, %v79, 0
    %v104 = vsel %vm90, %v80, 0
    %v107 = vsel %vm90, %v81, 0
    %v110 = vsel %vm90, %v82, 0
    %v113 = vsel %vm90, %v83, 0
    %115 = vmatprep.subr.bf16.mxu0 0
    %116 = vmatpush1.bf16.msra.mxu0 0
    %117 = vmatprep.subr.bf16.mxu0 0
    %118 = vmatpush1.bf16.msra.mxu0 0
    %119 = vmatprep.subr.bf16.mxu0 0
    %120 = vmatpush1.bf16.msra.mxu0 0
    %121 = vmatprep.subr.bf16.mxu0 0
    %122 = vmatpush1.bf16.msra.mxu0 0
    %123 = vmatprep.subr.bf16.mxu0 0
    %124 = vmatpush1.bf16.msra.mxu0 0
    %125 = vmatprep.subr.bf16.mxu0 0
    %126 = vmatpush1.bf16.msra.mxu0 0
    %127 = vmatprep.subr.bf16.mxu0 0
    %128 = vmatpush1.bf16.msra.mxu0 0
    %129 = vmatprep.subr.bf16.mxu0 0
    %130 = vmatpush1.bf16.msra.mxu0 %v88
    %131 = vmatprep.subr.bf16.mxu0 0
    %132 = vmatpush2.bf16.msra.mxu0 0
    %133 = vmatprep.subr.bf16.mxu0 0
    %134 = vmatpush2.bf16.msra.mxu0 0
    %135 = vmatprep.subr.bf16.mxu0 0
    %136 = vmatpush2.bf16.msra.mxu0 0
    %137 = vmatprep.subr.bf16.mxu0 0
    %138 = vmatpush2.bf16.msra.mxu0 0
    %139 = vmatprep.subr.bf16.mxu0 0
    %140 = vmatpush2.bf16.msra.mxu0 0
    %141 = vmatprep.subr.bf16.mxu0 0
    %142 = vmatpush2.bf16.msra.mxu0 0
    %143 = vmatprep.subr.bf16.mxu0 0
    %144 = vmatpush2.bf16.msra.mxu0 0
    %145 = vmatprep.subr.bf16.mxu0 0
    %146 = vmatpush2.bf16.msra.mxu0 0
    %147 = vmatprep.mubr.bf16.mxu0 0
    %148 = vmatmul.mubr.bf16.gmra.mxu0 %v92
    %v149 = vpop.f32.mrf.mxu0
    %v150 = vadd.f32 0.0, %v149
    %v151 = vpop.f32.mrf.mxu0
    %v152 = vpop.f32.mrf.mxu0
    %v153 = vadd.f32 0.0, %v152
    %v154 = vpop.f32.mrf.mxu0
    %155 = vmatprep.mubr.bf16.mxu0 0
    %156 = vmatmul.mubr.bf16.gmra.mxu0 %v95
    %v157 = vpop.f32.mrf.mxu0
    %v158 = vadd.f32 0.0, %v157
    %v159 = vpop.f32.mrf.mxu0
    %v160 = vpop.f32.mrf.mxu0
    %v161 = vadd.f32 0.0, %v160
    %v162 = vpop.f32.mrf.mxu0
    %163 = vmatprep.mubr.bf16.mxu0 0
    %164 = vmatmul.mubr.bf16.gmra.mxu0 %v98
    %v165 = vpop.f32.mrf.mxu0
    %v166 = vadd.f32 0.0, %v165
    %v167 = vpop.f32.mrf.mxu0
    %v168 = vpop.f32.mrf.mxu0
    %v169 = vadd.f32 0.0, %v168
    %v170 = vpop.f32.mrf.mxu0
    %171 = vmatprep.mubr.bf16.mxu0 0
    %172 = vmatmul.mubr.bf16.gmra.mxu0 %v101
    %v173 = vpop.f32.mrf.mxu0
    %v174 = vadd.f32 0.0, %v173
    %v175 = vpop.f32.mrf.mxu0
    %v176 = vpop.f32.mrf.mxu0
    %v177 = vadd.f32 0.0, %v176
    %v178 = vpop.f32.mrf.mxu0
    %179 = vmatprep.mubr.bf16.mxu0 0
    %180 = vmatmul.mubr.bf16.gmra.mxu0 %v104
    %v181 = vpop.f32.mrf.mxu0
    %v182 = vadd.f32 0.0, %v181
    %v183 = vpop.f32.mrf.mxu0
    %v184 = vpop.f32.mrf.mxu0
    %v185 = vadd.f32 0.0, %v184
    %v186 = vpop.f32.mrf.mxu0
    %187 = vmatprep.mubr.bf16.mxu0 0
    %188 = vmatmul.mubr.bf16.gmra.mxu0 %v107
    %v189 = vpop.f32.mrf.mxu0
    %v190 = vadd.f32 0.0, %v189
    %v191 = vpop.f32.mrf.mxu0
    %v192 = vpop.f32.mrf.mxu0
    %v193 = vadd.f32 0.0, %v192
    %v194 = vpop.f32.mrf.mxu0
    %195 = vmatprep.mubr.bf16.mxu0 0
    %196 = vmatmul.mubr.bf16.gmra.mxu0 %v110
    %v197 = vpop.f32.mrf.mxu0
    %v198 = vadd.f32 0.0, %v197
    %v199 = vpop.f32.mrf.mxu0
    %v200 = vpop.f32.mrf.mxu0
    %v201 = vadd.f32 0.0, %v200
    %v202 = vpop.f32.mrf.mxu0
    %203 = vmatprep.mubr.bf16.mxu0 0
    %204 = vmatmul.mubr.bf16.gmra.mxu0 %v113
    %v205 = vpop.f32.mrf.mxu0
    %v206 = vadd.f32 0.0, %v205
    %v207 = vpop.f32.mrf.mxu0
    %v208 = vpop.f32.mrf.mxu0
    %v209 = vadd.f32 0.0, %v208
    %v210 = vpop.f32.mrf.mxu0
    %211 = vdwg.mxu0
    %212 = vst [vmem:[#allocation2] sm:$0xff] %v150
    %213 = vst [vmem:[#allocation2 + $0x8] sm:$0xff] %v153
    %214 = vst [vmem:[#allocation2 + $0x10] sm:$0xff] %v158
    %215 = vst [vmem:[#allocation2 + $0x18] sm:$0xff] %v161
    %216 = vst [vmem:[#allocation2 + $0x20] sm:$0xff] %v166
    %217 = vst [vmem:[#allocation2 + $0x28] sm:$0xff] %v169
    %218 = vst [vmem:[#allocation2 + $0x30] sm:$0xff] %v174
    %219 = vst [vmem:[#allocation2 + $0x38] sm:$0xff] %v177
    %220 = vst [vmem:[#allocation2 + $0x40] sm:$0xff] %v182
    %221 = vst [vmem:[#allocation2 + $0x48] sm:$0xff] %v185
    %222 = vst [vmem:[#allocation2 + $0x50] sm:$0xff] %v190
    %223 = vst [vmem:[#allocation2 + $0x58] sm:$0xff] %v193
    %224 = vst [vmem:[#allocation2 + $0x60] sm:$0xff] %v198
    %225 = vst [vmem:[#allocation2 + $0x68] sm:$0xff] %v201
    %226 = vst [vmem:[#allocation2 + $0x70] sm:$0xff] %v206
    %227 = vst [vmem:[#allocation2 + $0x78] sm:$0xff] %v209
    %v228 = vld [vmem:[%s3] sm:$0xf]
    %v229 = vld [vmem:[%s1] sm:$0xf]
    %v230 = vld [vmem:[%s1 + $0x4] sm:$0xf]
    %v233 = vunpack.c.l.b16 %v229
    %v234 = vunpack.c.l.b16 %v230
    %v235 = vpack.c.b16 %v234, %v233
    %v238 = vsel %vm90, %v228, 0
    %240 = vmatprep.subr.bf16.mxu0 0
    %241 = vmatpush1.bf16.msra.mxu0 0
    %242 = vmatprep.subr.bf16.mxu0 0
    %243 = vmatpush1.bf16.msra.mxu0 0
    %244 = vmatprep.subr.bf16.mxu0 0
    %245 = vmatpush1.bf16.msra.mxu0 0
    %246 = vmatprep.subr.bf16.mxu0 0
    %247 = vmatpush1.bf16.msra.mxu0 0
    %248 = vmatprep.subr.bf16.mxu0 0
    %249 = vmatpush1.bf16.msra.mxu0 0
    %250 = vmatprep.subr.bf16.mxu0 0
    %251 = vmatpush1.bf16.msra.mxu0 0
    %252 = vmatprep.subr.bf16.mxu0 0
    %253 = vmatpush1.bf16.msra.mxu0 0
    %254 = vmatprep.subr.bf16.mxu0 0
    %255 = vmatpush1.bf16.msra.mxu0 %v235
    %256 = vmatprep.subr.bf16.mxu0 0
    %257 = vmatpush2.bf16.msra.mxu0 0
    %258 = vmatprep.subr.bf16.mxu0 0
    %259 = vmatpush2.bf16.msra.mxu0 0
    %260 = vmatprep.subr.bf16.mxu0 0
    %261 = vmatpush2.bf16.msra.mxu0 0
    %262 = vmatprep.subr.bf16.mxu0 0
    %263 = vmatpush2.bf16.msra.mxu0 0
    %264 = vmatprep.subr.bf16.mxu0 0
    %265 = vmatpush2.bf16.msra.mxu0 0
    %266 = vmatprep.subr.bf16.mxu0 0
    %267 = vmatpush2.bf16.msra.mxu0 0
    %268 = vmatprep.subr.bf16.mxu0 0
    %269 = vmatpush2.bf16.msra.mxu0 0
    %270 = vmatprep.subr.bf16.mxu0 0
    %271 = vmatpush2.bf16.msra.mxu0 0
    %272 = vmatprep.mubr.bf16.mxu0 0
    %273 = vmatmul.mubr.bf16.gmra.mxu0 %v238
    %v274 = vpop.f32.mrf.mxu0
    %v275 = vadd.f32 0.0, %v274
    %v276 = vpop.f32.mrf.mxu0
    %v277 = vpop.f32.mrf.mxu0
    %v278 = vpop.f32.mrf.mxu0
    %279 = vdwg.mxu0
    %280 = vst [vmem:[#allocation4] sm:$0xff] %v275
    %v281 = vld [vmem:[%s4] sm:$0xf]
    %v282 = vld [vmem:[%s4 + $0x4] sm:$0xf]
    %v283 = vld [vmem:[%s4 + $0x8] sm:$0xf]
    %v284 = vld [vmem:[%s4 + $0xc] sm:$0xf]
    %v285 = vld [vmem:[%s1] sm:$0xf]
    %v286 = vld [vmem:[%s1 + $0x4] sm:$0xf]
    %v291 = vunpack.c.l.b16 %v281
    %v292 = vunpack.c.l.b16 %v282
    %v293 = vunpack.c.l.b16 %v283
    %v294 = vunpack.c.l.b16 %v284
    %v295 = vpack.c.b16 %v292, %v291
    %v296 = vpack.c.b16 %v294, %v293
    %v299 = vunpack.c.l.b16 %v285
    %v300 = vunpack.c.l.b16 %v286
    %v301 = vpack.c.b16 %v300, %v299
    %v304 = vsel %vm90, %v295, 0
    %v307 = vsel %vm90, %v296, 0
    %309 = vmatprep.subr.bf16.mxu0 0
    %310 = vmatpush1.bf16.msra.mxu0 0
    %311 = vmatprep.subr.bf16.mxu0 0
    %312 = vmatpush1.bf16.msra.mxu0 0
    %313 = vmatprep.subr.bf16.mxu0 0
    %314 = vmatpush1.bf16.msra.mxu0 0
    %315 = vmatprep.subr.bf16.mxu0 0
    %316 = vmatpush1.bf16.msra.mxu0 0
    %317 = vmatprep.subr.bf16.mxu0 0
    %318 = vmatpush1.bf16.msra.mxu0 0
    %319 = vmatprep.subr.bf16.mxu0 0
    %320 = vmatpush1.bf16.msra.mxu0 0
    %321 = vmatprep.subr.bf16.mxu0 0
    %322 = vmatpush1.bf16.msra.mxu0 0
    %323 = vmatprep.subr.bf16.mxu0 0
    %324 = vmatpush1.bf16.msra.mxu0 %v301
    %325 = vmatprep.subr.bf16.mxu0 0
    %326 = vmatpush2.bf16.msra.mxu0 0
    %327 = vmatprep.subr.bf16.mxu0 0
    %328 = vmatpush2.bf16.msra.mxu0 0
    %329 = vmatprep.subr.bf16.mxu0 0
    %330 = vmatpush2.bf16.msra.mxu0 0
    %331 = vmatprep.subr.bf16.mxu0 0
    %332 = vmatpush2.bf16.msra.mxu0 0
    %333 = vmatprep.subr.bf16.mxu0 0
    %334 = vmatpush2.bf16.msra.mxu0 0
    %335 = vmatprep.subr.bf16.mxu0 0
    %336 = vmatpush2.bf16.msra.mxu0 0
    %337 = vmatprep.subr.bf16.mxu0 0
    %338 = vmatpush2.bf16.msra.mxu0 0
    %339 = vmatprep.subr.bf16.mxu0 0
    %340 = vmatpush2.bf16.msra.mxu0 0
    %341 = vmatprep.mubr.bf16.mxu0 0
    %342 = vmatmul.mubr.bf16.gmra.mxu0 %v304
    %v343 = vpop.f32.mrf.mxu0
    %v344 = vadd.f32 0.0, %v343
    %v345 = vpop.f32.mrf.mxu0
    %v346 = vpop.f32.mrf.mxu0
    %v347 = vadd.f32 0.0, %v346
    %v348 = vpop.f32.mrf.mxu0
    %349 = vmatprep.mubr.bf16.mxu0 0
    %350 = vmatmul.mubr.bf16.gmra.mxu0 %v307
    %v351 = vpop.f32.mrf.mxu0
    %v352 = vadd.f32 0.0, %v351
    %v353 = vpop.f32.mrf.mxu0
    %v354 = vpop.f32.mrf.mxu0
    %v355 = vadd.f32 0.0, %v354
    %v356 = vpop.f32.mrf.mxu0
    %357 = vdwg.mxu0
    %v358 = vpack.c.bf16 %v347, %v344
    %v359 = vpack.c.bf16 %v355, %v352
    %v362 = vunpack.c.l.b16 %v358
    %v363 = vunpack.c.h.b16 %v358
    %v364 = vunpack.c.l.b16 %v359
    %v365 = vunpack.c.h.b16 %v359
    %v366 = vpack.c.b16 %v362, %v362
    %v367 = vpack.c.b16 %v363, %v363
    %v368 = vpack.c.b16 %v364, %v364
    %v369 = vpack.c.b16 %v365, %v365
    %374 = vst [vmem:[#allocation6] sm:$0xf] %v366
    %375 = vst [vmem:[#allocation6 + $0x4] sm:$0xf] %v367
    %376 = vst [vmem:[#allocation6 + $0x8] sm:$0xf] %v368
    %377 = vst [vmem:[#allocation6 + $0xc] sm:$0xf] %v369
    // Predicated region
    $region22: #{tpu_custom_call.1} parent=1 // pred_check
      _
    $region23: #{tpu_custom_call.1} parent=1 // pred_check_branch
      %379 = sbr.rel (0) target = $region25
    $region24: #{tpu_custom_call.1} parent=1 // pred_region
      %s381 = ssub.s32 2048, 2048
      %382 = vsyncadd [#allocation3], %s381
      %s383 = sshll.u32 [#allocation2], 4
      %s384 = int_to_ptr.vmem [resolvable:$true] %s383
      %389 = dma.vmem_to_hbm [thread:$0]  %s384, 2048, %s5, [#allocation3], 128, 128, 8
    $region25: #{tpu_custom_call.1} parent=1 // pred_fallthru
      _
    // Predicated region
    $region26: #{tpu_custom_call.1} parent=1 // pred_check
      _
    $region27: #{tpu_custom_call.1} parent=1 // pred_check_branch
      %391 = sbr.rel (0) target = $region29
    $region28: #{tpu_custom_call.1} parent=1 // pred_region
      %s393 = ssub.s32 128, 128
      %394 = vsyncadd [#allocation5], %s393
      %s396 = sshll.u32 [#allocation4], 4
      %s397 = int_to_ptr.vmem [resolvable:$true] %s396
      %399 = dma.vmem_to_hbm [thread:$0]  %s397, 128, %s6, [#allocation5]
    $region29: #{tpu_custom_call.1} parent=1 // pred_fallthru
      _
    // Predicated region
    $region30: #{tpu_custom_call.1} parent=1 // pred_check
      _
    $region31: #{tpu_custom_call.1} parent=1 // pred_check_branch
      %401 = sbr.rel (0) target = $region33
    $region32: #{tpu_custom_call.1} parent=1 // pred_region
      %s403 = ssub.s32 256, 256
      %404 = vsyncadd [#allocation5], %s403
      %s405 = sshll.u32 [#allocation6], 4
      %s406 = int_to_ptr.vmem [resolvable:$true] %s405
      %411 = dma.vmem_to_hbm [thread:$0]  %s406, 256, %s7, [#allocation5], 64, 64, 4
    $region33: #{tpu_custom_call.1} parent=1 // pred_fallthru
      _
    // Predicated region
    $region34: #{tpu_custom_call.1} parent=1 // pred_check
      _
    $region35: #{tpu_custom_call.1} parent=1 // pred_check_branch
      %413 = sbr.rel (0) target = $region37
    $region36: #{tpu_custom_call.1} parent=1 // pred_region
      %414 = dma.done [#allocation3], 2048
    $region37: #{tpu_custom_call.1} parent=1 // pred_fallthru
      _
    // Predicated region
    $region38: #{tpu_custom_call.1} parent=1 // pred_check
      _
    $region39: #{tpu_custom_call.1} parent=1 // pred_check_branch
      %416 = sbr.rel (0) target = $region41
    $region40: #{tpu_custom_call.1} parent=1 // pred_region
      %417 = dma.done [#allocation5], 128
    $region41: #{tpu_custom_call.1} parent=1 // pred_fallthru
      _
    // Predicated region
    $region42: #{tpu_custom_call.1} parent=1 // pred_check
      _
    $region43: #{tpu_custom_call.1} parent=1 // pred_check_branch
      %419 = sbr.rel (0) target = $region45
    $region44: #{tpu_custom_call.1} parent=1 // pred_region
      %420 = dma.done [#allocation5], 256
    $region45: #{tpu_custom_call.1} parent=1 // pred_fallthru
      _
    %421 = vsyncpa [#allocation3], 1
    %422 = vsyncpa [#allocation5], 1

</llo_original>
